<compile_context>
chip_gen: v6e
topology: v6e:2x2x1
jax: 0.10.0
libtpu: 0.0.40
codegen_flags: <defaults>
</compile_context>

<pallas_src>
import functools

import jax
import jax.numpy as jnp
import numpy as np
from jax.experimental import pallas as pl
from jax.experimental.pallas import tpu as pltpu

LN_EPS = 1e-5      # torch.nn.LayerNorm default eps
OPM_EPS = 1e-18    # OuterProductMean eps


# ----------------------------------------------------------------------------
# Helpers: tile selection + VMEM budgeting
# ----------------------------------------------------------------------------
def _ceil_to(x, m):
    return -(-x // m) * m


def _block_bytes(shape, dtype):
    """VMEM footprint of one block (lane padded to 128, sublane to 8)."""
    shape = list(shape)
    if len(shape) >= 1:
        shape[-1] = max(128, _ceil_to(shape[-1], 128))
    if len(shape) >= 2:
        shape[-2] = _ceil_to(max(shape[-2], 1), 8)
    num = 1
    for v in shape:
        num *= v
    return num * np.dtype(dtype).itemsize


def _vmem_limit(pipelined, resident=(), headroom=6 << 20):
    """2x for double-buffered grid-varying blocks, 1x for constant-index blocks
    and scratch, plus headroom; clamped below v7x's 64 MiB physical VMEM."""
    total = (2 * sum(_block_bytes(s, d) for s, d in pipelined)
             + sum(_block_bytes(s, d) for s, d in resident) + headroom)
    return int(min(max(total, 16 << 20), 56 << 20))


def _pick_row_tile(total, target):
    t = min(total, max(8, target))
    for cand in range(t, 7, -1):
        if total % cand == 0 and cand % 8 == 0:
            return cand
    return total


def _pick_j_tile(n, h, target):
    t = min(n, max(1, target))
    for cand in range(t, 0, -1):
        if n % cand:
            continue
        if cand == n or (cand * h) % 128 == 0:
            return cand
    return n


def _pick_s_tile(s, target):
    if s <= target:
        return s
    for cand in range(target, 127, -1):
        if cand % 128 == 0 and s % cand == 0:
            return cand
    return s


# ----------------------------------------------------------------------------
# Kernel 1: LayerNorm + fused left/right hidden projection + mask/sqrt(seq-w)
#   rows = flattened (s, n); one [TILE_R, d] @ [d, 2h] MXU dot per step.
# ----------------------------------------------------------------------------
def _ln_proj_kernel(x_ref, sc_ref, gamma_ref, beta_ref, wlr_ref,
                    a_ref, b_ref, *, h):
    x = x_ref[0]                                            # [TILE_R, d] f32
    mu = jnp.mean(x, axis=-1, keepdims=True)
    xc = x - mu
    var = jnp.mean(xc * xc, axis=-1, keepdims=True)
    xn = xc * jax.lax.rsqrt(var + LN_EPS)
    xn = xn * gamma_ref[...] + beta_ref[...]                # [1, d] broadcast
    ab = jnp.dot(xn, wlr_ref[...],
                 preferred_element_type=jnp.float32)        # [TILE_R, 2h]
    ab = ab * sc_ref[0]                                     # per-row scale
    a_ref[0] = ab[:, :h].astype(a_ref.dtype)                # left  hidden (bf16)
    b_ref[0] = ab[:, h:].astype(b_ref.dtype)                # right hidden (bf16)


# ----------------------------------------------------------------------------
# Kernel 2: outer product mean over s + pairwise projection + SwiGLU + mask
#   grid = (batch, j-tile, s-tile); per step:
#     m[(c,i),(j',e)] += a[(c,i),s_tile] @ b[s_tile,(j',e)]      (wide MXU dot)
#   on the last s-tile:
#     relayout m -> mj[(j',i),(c,e)]   (bf16)
#     y = mj @ W + bias                                          (ONE batched dot)
#     out[i, j', :] = SwiGLU(y) * pm[i, j']                      (lane-dense stores)
# ----------------------------------------------------------------------------
def _opm_kernel(a_ref, b_ref, w_ref, bias_ref, pm_ref, out_ref,
                m_ref, mj_ref, *, n, h, dp, tile_j):
    k = pl.program_id(2)

    @pl.when(k == 0)
    def _():
        m_ref[...] = jnp.zeros_like(m_ref)

    # bf16 operands, f32 accumulation on the MXU.
    m_ref[...] += jnp.dot(a_ref[0], b_ref[0],
                          preferred_element_type=jnp.float32)   # [h*n, TILE_J*h]

    @pl.when(k == pl.num_programs(2) - 1)
    def _():
        # Relayout m[(c,i),(j',e)] -> mj[(j',i),(c,e)], cast to bf16.
        # TODO(synk): a single bulk transpose would replace these block copies,
        # but rank>2 transposes / lane-merging reshapes do not lower reliably
        # in Mosaic; block copies are the safe path.
        for jj in range(tile_j):
            for c in range(h):
                mj_ref[jj * n:(jj + 1) * n, c * h:(c + 1) * h] = (
                    m_ref[c * n:(c + 1) * n, jj * h:(jj + 1) * h]
                    .astype(mj_ref.dtype))

        # One batched pair projection for the whole j-tile (bf16 MXU operands).
        y = jnp.dot(mj_ref[...], w_ref[...],
                    preferred_element_type=jnp.float32)         # [tj*n, 2*dp]
        y = y + bias_ref[...]
        x = y[:, :dp]
        g = y[:, dp:]
        o = jax.nn.silu(g) * x                                  # SwiGLU, f32
        pm = pm_ref[0, 0]                                       # [n, TILE_J]
        for jj in range(tile_j):                                # lane-dense stores
            out_ref[0, :, jj * dp:(jj + 1) * dp] = (
                o[jj * n:(jj + 1) * n, :] * pm[:, jj:jj + 1]
            ).astype(out_ref.dtype)


# ----------------------------------------------------------------------------
# Wrapper
# ----------------------------------------------------------------------------
def outer_product_mean(msa, mask, msa_mask, params, full_mask=None,
                       pairwise_mask=None, seq_weights=None,
                       tile_rows=None, tile_j=None, tile_s=None,
                       out_dtype=jnp.float32):
    b, s, n, d = msa.shape
    h = params["w_left"].shape[1]
    dp2 = params["w_pair"].shape[1]
    dp = dp2 // 2
    assert n % 8 == 0, "residue count must be a multiple of 8 for this kernel"
    assert dp % 128 == 0, "dim_pairwise must be a multiple of 128"

    if full_mask is None:
        full_mask = jnp.ones((b, s, n), dtype=bool)
    if pairwise_mask is None:
        pairwise_mask = mask[:, :, None] & mask[:, None, :]
    if seq_weights is None:
        # torch: ones / msa_mask.sum(-1, keepdim=True)
        seq_weights = jnp.ones((b, s), jnp.float32) / msa_mask.sum(-1, keepdims=True)

    scaled_sw = jnp.sqrt(seq_weights + OPM_EPS)                       # [b, s]
    scale = full_mask.astype(jnp.float32) * scaled_sw[:, :, None]     # [b, s, n]

    tile_r = _pick_row_tile(s * n, 2048 if tile_rows is None else tile_rows)
    tj = _pick_j_tile(n, h, max(1, 256 // h) if tile_j is None else tile_j)
    ts = _pick_s_tile(s, 512 if tile_s is None else tile_s)
    n_row_tiles = (s * n) // tile_r
    n_jt = n // tj
    n_st = s // ts

    # ---- kernel 1: LayerNorm + fused [d, 2h] projection + scaling ----
    x2 = msa.reshape(b, s * n, d)
    # TODO(synk): per-row scale is a lane-1 block (padded in VMEM); an in-kernel
    # [1,R]->[R,1] transpose is not reliably lowerable, so we keep the column.
    sc2 = scale.reshape(b, s * n, 1)
    gamma = params["ln_gamma"].reshape(1, d)
    beta = params["ln_beta"].reshape(1, d)
    w_lr = jnp.concatenate([params["w_left"], params["w_right"]], axis=1)  # [d, 2h]

    k1_pipe = [((1, tile_r, d), jnp.float32), ((1, tile_r, 1), jnp.float32),
               ((1, tile_r, h), jnp.bfloat16), ((1, tile_r, h), jnp.bfloat16)]
    k1_res = [((1, d), jnp.float32), ((1, d), jnp.float32),
              ((d, 2 * h), jnp.float32)]
    a_flat, b_flat = pl.pallas_call(
        functools.partial(_ln_proj_kernel, h=h),
        out_shape=(jax.ShapeDtypeStruct((b, s * n, h), jnp.bfloat16),
                   jax.ShapeDtypeStruct((b, s * n, h), jnp.bfloat16)),
        grid=(b, n_row_tiles),
        in_specs=[
            pl.BlockSpec((1, tile_r, d), lambda bi, r: (bi, r, 0)),
            pl.BlockSpec((1, tile_r, 1), lambda bi, r: (bi, r, 0)),
            pl.BlockSpec((1, d), lambda bi, r: (0, 0)),
            pl.BlockSpec((1, d), lambda bi, r: (0, 0)),
            pl.BlockSpec((d, 2 * h), lambda bi, r: (0, 0)),
        ],
        out_specs=(pl.BlockSpec((1, tile_r, h), lambda bi, r: (bi, r, 0)),
                   pl.BlockSpec((1, tile_r, h), lambda bi, r: (bi, r, 0))),
        compiler_params=pltpu.CompilerParams(
            dimension_semantics=("parallel", "parallel"),
            vmem_limit_bytes=_vmem_limit(k1_pipe, k1_res)),
    )(x2, sc2, gamma, beta, w_lr)

    # ---- glue (minimal XLA re-layout) ----
    # right hidden: [b, s*n, h] -> [b, s, n*h] is a FREE contiguous reshape.
    b_sje = b_flat.reshape(b, s, n * h)
    # left hidden: single bf16 XLA transpose to rows=(c, i), lanes=s.
    a_cis = jnp.transpose(a_flat.reshape(b, s, n, h), (0, 3, 2, 1)).reshape(b, h * n, s)
    # pairwise mask as [b, j_tile, i, j_local] blocks.
    pm4 = jnp.transpose(
        pairwise_mask.astype(jnp.float32).reshape(b, n, n_jt, tj), (0, 2, 1, 3))
    bias2 = params["b_pair"].reshape(1, dp2).astype(jnp.float32)
    wp_bf = params["w_pair"].astype(jnp.bfloat16)               # bf16 MXU operand

    # ---- kernel 2: outer-product-mean + batched pair projection ----
    k2_pipe = [((1, h * n, ts), jnp.bfloat16), ((1, ts, tj * h), jnp.bfloat16),
               ((1, 1, n, tj), jnp.float32), ((1, n, tj * dp), out_dtype)]
    k2_res = [((h * h, dp2), jnp.bfloat16), ((1, dp2), jnp.float32),
              ((h * n, tj * h), jnp.float32), ((tj * n, h * h), jnp.bfloat16)]
    out_flat = pl.pallas_call(
        functools.partial(_opm_kernel, n=n, h=h, dp=dp, tile_j=tj),
        out_shape=jax.ShapeDtypeStruct((b, n, n * dp), out_dtype),
        grid=(b, n_jt, n_st),
        in_specs=[
            pl.BlockSpec((1, h * n, ts), lambda bi, j, k: (bi, 0, k)),
            pl.BlockSpec((1, ts, tj * h), lambda bi, j, k: (bi, k, j)),
            pl.BlockSpec((h * h, dp2), lambda bi, j, k: (0, 0)),
            pl.BlockSpec((1, dp2), lambda bi, j, k: (0, 0)),
            pl.BlockSpec((1, 1, n, tj), lambda bi, j, k: (bi, j, 0, 0)),
        ],
        out_specs=pl.BlockSpec((1, n, tj * dp), lambda bi, j, k: (bi, 0, j)),
        scratch_shapes=[pltpu.VMEM((h * n, tj * h), jnp.float32),   # f32 accumulator
                        pltpu.VMEM((tj * n, h * h), jnp.bfloat16)],  # relayout (bf16)
        compiler_params=pltpu.CompilerParams(
            dimension_semantics=("parallel", "parallel", "arbitrary"),
            vmem_limit_bytes=_vmem_limit(k2_pipe, k2_res)),
    )(a_cis, b_sje, wp_bf, bias2, pm4)

    # output is already [b, i, j*dp] (i-major, lane-dense) -> free reshape.
    outer = out_flat.reshape(b, n, n, dp)
    # return_seq_weights=False -> seq_weights is None
    return outer, None


# ----------------------------------------------------------------------------
# Pure-JAX reference (mirrors the PyTorch forward; matches the kernel's bf16
# MXU operands: a/b hidden, the accumulated outer product, and w_pair).
# ----------------------------------------------------------------------------
def reference(msa, mask, msa_mask, params, full_mask):
    b, s, n, d = msa.shape
    h = params["w_left"].shape[1]
    dp2 = params["w_pair"].shape[1]
    dp = dp2 // 2
    pairwise_mask = mask[:, :, None] & mask[:, None, :]

    with jax.default_matmul_precision("highest"):
        mu = msa.mean(-1, keepdims=True)
        var = ((msa - mu) ** 2).mean(-1, keepdims=True)
        ln = (msa - mu) / jnp.sqrt(var + LN_EPS) * params["ln_gamma"] + params["ln_beta"]

        sw = jnp.ones((b, s), jnp.float32) / msa_mask.sum(-1, keepdims=True)
        scale = full_mask.astype(jnp.float32) * jnp.sqrt(sw + OPM_EPS)[:, :, None]

        a = (ln @ params["w_left"]) * scale[..., None]
        bb = (ln @ params["w_right"]) * scale[..., None]
        # kernel performs the MXU contractions with bf16 operands
        a = a.astype(jnp.bfloat16).astype(jnp.float32)
        bb = bb.astype(jnp.bfloat16).astype(jnp.float32)
        a = jnp.swapaxes(a, -2, -3)                                      # [b, n, s, h]
        bb = jnp.swapaxes(bb, -2, -3)

        outer = jnp.einsum("bisc,bjse->bijce", a, bb)
        outer = outer.astype(jnp.bfloat16).astype(jnp.float32)           # mj scratch
        outer = outer.reshape(b, n, n, h * h)
        wp = params["w_pair"].astype(jnp.bfloat16).astype(jnp.float32)   # bf16 weight
        outer = outer @ wp + params["b_pair"]
        x, g = outer[..., :dp], outer[..., dp:]
        outer = jax.nn.silu(g) * x
        outer = outer * pairwise_mask[..., None].astype(outer.dtype)
    return outer


if __name__ == "__main__":
    # shapes consistent with the module defaults: dim_hidden=32, dim_msa=64,
    # dim_pairwise=128; b=2, s=256 (MSA depth, exercises the s-reduction axis),
    # n=32 (residues).
    B, S, N, D = 2, 256, 32, 64
    H, DP = 32, 128

    key = jax.random.PRNGKey(0)
    k = jax.random.split(key, 7)
    params = {
        "ln_gamma": 1.0 + 0.1 * jax.random.normal(k[0], (D,), jnp.float32),
        "ln_beta": 0.1 * jax.random.normal(k[1], (D,), jnp.float32),
        "w_left": jax.random.normal(k[2], (D, H), jnp.float32) / jnp.sqrt(D),
        "w_right": jax.random.normal(k[3], (D, H), jnp.float32) / jnp.sqrt(D),
        "w_pair": jax.random.normal(k[4], (H * H, 2 * DP), jnp.float32) / jnp.sqrt(H * H),
        "b_pair": 0.1 * jax.random.normal(k[5], (2 * DP,), jnp.float32),
    }

    msa = jax.random.normal(k[6], (B, S, N, D), jnp.float32)
    # deterministic masks (second batch has some residues / sequences masked out)
    mask = jnp.arange(N)[None, :] < jnp.array([N, N - 5])[:, None]        # [B, N]
    msa_mask = jnp.arange(S)[None, :] < jnp.array([S, S - 37])[:, None]   # [B, S]
    full_mask = msa_mask[:, :, None] & mask[:, None, :]                   # [B, S, N]

    out, seq_w = outer_product_mean(msa, mask, msa_mask, params,
                                    full_mask=full_mask,
                                    tile_rows=128, tile_j=8, tile_s=128)
    out = jax.block_until_ready(out)

    ref = reference(msa, mask, msa_mask, params, full_mask)
    np.testing.assert_allclose(np.asarray(out), np.asarray(ref), rtol=1e-2, atol=1e-2)
    assert out.shape == (B, N, N, DP)
    assert seq_w is None  # return_seq_weights=False

    print("KERNEL_OK")
</pallas_src>

<mosaic_0001>
module attributes {stable_mosaic.version = 11 : i64} {
  func.func @_ln_proj_kernel(%arg0: i32, %arg1: i32, %arg2: memref<1x128x64xf32, #tpu.memory_space<vmem>>, %arg3: memref<1x128x1xf32, #tpu.memory_space<vmem>>, %arg4: memref<1x64xf32, #tpu.memory_space<vmem>>, %arg5: memref<1x64xf32, #tpu.memory_space<vmem>>, %arg6: memref<64x64xf32, #tpu.memory_space<vmem>>, %arg7: memref<1x128x32xbf16, #tpu.memory_space<vmem>>, %arg8: memref<1x128x32xbf16, #tpu.memory_space<vmem>>) attributes {dimension_semantics = [#tpu.dimension_semantics<parallel>, #tpu.dimension_semantics<parallel>], iteration_bounds = array<i64: 2, 64>, scalar_prefetch = 0 : i64, scratch_operands = 0 : i64, tpu.core_type = #tpu.core_type<tc>, window_params = [{transform_indices = @transform_0, window_bounds = array<i64: 1, 128, 64>}, {transform_indices = @transform_1, window_bounds = array<i64: 1, 128, 1>}, {pipeline_mode = #tpu.pipeline_mode<synchronous>, transform_indices = @transform_2, window_bounds = array<i64: 1, 64>}, {pipeline_mode = #tpu.pipeline_mode<synchronous>, transform_indices = @transform_3, window_bounds = array<i64: 1, 64>}, {pipeline_mode = #tpu.pipeline_mode<synchronous>, transform_indices = @transform_4, window_bounds = array<i64: 64, 64>}, {transform_indices = @transform_5, window_bounds = array<i64: 1, 128, 32>}, {transform_indices = @transform_6, window_bounds = array<i64: 1, 128, 32>}]} {
    %c0 = arith.constant 0 : index
    %c0_0 = arith.constant 0 : index
    %c0_1 = arith.constant 0 : index
    %0 = vector.load %arg2[%c0, %c0_0, %c0_1] : memref<1x128x64xf32, #tpu.memory_space<vmem>>, vector<1x128x64xf32>
    %1 = vector.shape_cast %0 : vector<1x128x64xf32> to vector<128x64xf32>
    %cst = arith.constant dense<0.000000e+00> : vector<128xf32>
    %2 = vector.multi_reduction <add>, %1, %cst [1] : vector<128x64xf32> to vector<128xf32>
    %3 = vector.shape_cast %2 : vector<128xf32> to vector<128x1xf32>
    %cst_2 = arith.constant 6.400000e+01 : f32
    %4 = vector.broadcast %cst_2 : f32 to vector<128x1xf32>
    %5 = arith.divf %3, %4 : vector<128x1xf32>
    %6 = vector.broadcast %5 : vector<128x1xf32> to vector<128x64xf32>
    %7 = arith.subf %1, %6 : vector<128x64xf32>
    %8 = arith.mulf %7, %7 : vector<128x64xf32>
    %cst_3 = arith.constant dense<0.000000e+00> : vector<128xf32>
    %9 = vector.multi_reduction <add>, %8, %cst_3 [1] : vector<128x64xf32> to vector<128xf32>
    %10 = vector.shape_cast %9 : vector<128xf32> to vector<128x1xf32>
    %cst_4 = arith.constant 6.400000e+01 : f32
    %11 = vector.broadcast %cst_4 : f32 to vector<128x1xf32>
    %12 = arith.divf %10, %11 : vector<128x1xf32>
    %cst_5 = arith.constant 9.99999974E-6 : f32
    %13 = vector.broadcast %cst_5 : f32 to vector<128x1xf32>
    %14 = arith.addf %12, %13 : vector<128x1xf32>
    %15 = math.rsqrt %14 : vector<128x1xf32>
    %16 = vector.broadcast %15 : vector<128x1xf32> to vector<128x64xf32>
    %17 = arith.mulf %7, %16 : vector<128x64xf32>
    %c0_6 = arith.constant 0 : index
    %c0_7 = arith.constant 0 : index
    %18 = vector.load %arg4[%c0_6, %c0_7] : memref<1x64xf32, #tpu.memory_space<vmem>>, vector<1x64xf32>
    %19 = vector.broadcast %18 : vector<1x64xf32> to vector<128x64xf32>
    %20 = arith.mulf %17, %19 : vector<128x64xf32>
    %c0_8 = arith.constant 0 : index
    %c0_9 = arith.constant 0 : index
    %21 = vector.load %arg5[%c0_8, %c0_9] : memref<1x64xf32, #tpu.memory_space<vmem>>, vector<1x64xf32>
    %22 = vector.broadcast %21 : vector<1x64xf32> to vector<128x64xf32>
    %23 = arith.addf %20, %22 : vector<128x64xf32>
    %c0_10 = arith.constant 0 : index
    %c0_11 = arith.constant 0 : index
    %24 = vector.load %arg6[%c0_10, %c0_11] : memref<64x64xf32, #tpu.memory_space<vmem>>, vector<64x64xf32>
    %cst_12 = arith.constant dense<0.000000e+00> : vector<128x64xf32>
    %25 = tpu.matmul %23, %24, %cst_12 {dimension_numbers = #tpu.dot_dimension_numbers<[1], [0], [0], [1], [0, 0, 1, 1], [], []>} : vector<128x64xf32>, vector<64x64xf32>, vector<128x64xf32> -> vector<128x64xf32>
    %c0_13 = arith.constant 0 : index
    %c0_14 = arith.constant 0 : index
    %c0_15 = arith.constant 0 : index
    %26 = vector.load %arg3[%c0_13, %c0_14, %c0_15] : memref<1x128x1xf32, #tpu.memory_space<vmem>>, vector<1x128x1xf32>
    %27 = vector.shape_cast %26 : vector<1x128x1xf32> to vector<128x1xf32>
    %28 = vector.broadcast %27 : vector<128x1xf32> to vector<128x64xf32>
    %29 = arith.mulf %25, %28 : vector<128x64xf32>
    %30 = vector.extract_strided_slice %29 {offsets = [0, 0], sizes = [128, 32], strides = [1, 1]} : vector<128x64xf32> to vector<128x32xf32>
    %31 = arith.truncf %30 : vector<128x32xf32> to vector<128x32xbf16>
    %c0_16 = arith.constant 0 : index
    %c0_17 = arith.constant 0 : index
    %c0_18 = arith.constant 0 : index
    %32 = vector.load %arg7[%c0_16, %c0_17, %c0_18] : memref<1x128x32xbf16, #tpu.memory_space<vmem>>, vector<1x128x32xbf16>
    %33 = vector.shape_cast %32 : vector<1x128x32xbf16> to vector<128x32xbf16>
    %34 = vector.shape_cast %31 : vector<128x32xbf16> to vector<1x128x32xbf16>
    tpu.vector_store %arg7[%c0_16, %c0_17, %c0_18], %34 {strides = array<i32>} : memref<1x128x32xbf16, #tpu.memory_space<vmem>>, vector<1x128x32xbf16>,
    %35 = vector.extract_strided_slice %29 {offsets = [0, 32], sizes = [128, 32], strides = [1, 1]} : vector<128x64xf32> to vector<128x32xf32>
    %36 = arith.truncf %35 : vector<128x32xf32> to vector<128x32xbf16>
    %c0_19 = arith.constant 0 : index
    %c0_20 = arith.constant 0 : index
    %c0_21 = arith.constant 0 : index
    %37 = vector.load %arg8[%c0_19, %c0_20, %c0_21] : memref<1x128x32xbf16, #tpu.memory_space<vmem>>, vector<1x128x32xbf16>
    %38 = vector.shape_cast %37 : vector<1x128x32xbf16> to vector<128x32xbf16>
    %39 = vector.shape_cast %36 : vector<128x32xbf16> to vector<1x128x32xbf16>
    tpu.vector_store %arg8[%c0_19, %c0_20, %c0_21], %39 {strides = array<i32>} : memref<1x128x32xbf16, #tpu.memory_space<vmem>>, vector<1x128x32xbf16>,
    return
  }
  func.func @transform_0(%arg0: i32, %arg1: i32) -> (i32, i32, i32) {
    %c0_i32 = arith.constant 0 : i32
    %c0_i32_0 = arith.constant 0 : i32
    return %arg0, %arg1, %c0_i32 : i32, i32, i32
  }
  func.func @transform_1(%arg0: i32, %arg1: i32) -> (i32, i32, i32) {
    %c0_i32 = arith.constant 0 : i32
    %c0_i32_0 = arith.constant 0 : i32
    return %arg0, %arg1, %c0_i32 : i32, i32, i32
  }
  func.func @transform_2(%arg0: i32, %arg1: i32) -> (i32, i32) {
    %c0_i32 = arith.constant 0 : i32
    %c0_i32_0 = arith.constant 0 : i32
    %c0_i32_1 = arith.constant 0 : i32
    return %c0_i32, %c0_i32_0 : i32, i32
  }
  func.func @transform_3(%arg0: i32, %arg1: i32) -> (i32, i32) {
    %c0_i32 = arith.constant 0 : i32
    %c0_i32_0 = arith.constant 0 : i32
    %c0_i32_1 = arith.constant 0 : i32
    return %c0_i32, %c0_i32_0 : i32, i32
  }
  func.func @transform_4(%arg0: i32, %arg1: i32) -> (i32, i32) {
    %c0_i32 = arith.constant 0 : i32
    %c0_i32_0 = arith.constant 0 : i32
    %c0_i32_1 = arith.constant 0 : i32
    return %c0_i32, %c0_i32_0 : i32, i32
  }
  func.func @transform_5(%arg0: i32, %arg1: i32) -> (i32, i32, i32) {
    %c0_i32 = arith.constant 0 : i32
    %c0_i32_0 = arith.constant 0 : i32
    return %arg0, %arg1, %c0_i32 : i32, i32, i32
  }
  func.func @transform_6(%arg0: i32, %arg1: i32) -> (i32, i32, i32) {
    %c0_i32 = arith.constant 0 : i32
    %c0_i32_0 = arith.constant 0 : i32
    return %arg0, %arg1, %c0_i32 : i32, i32, i32
  }
}

</mosaic_0001>

<llo_original>
// kernel: tpu_custom_call.1
$region0: #{tpu_custom_call.1}
  #allocation0 [shape = 'u32[]', space=smem, size = 0x4, offset = 0x4, fixed_abs, tag = 'smem constant byte address 0x4 - core index']
  #allocation1 [shape = 'u32[144,128]{1,0:T(1,128)}', space=vmem, size = 0x12000, scoped, tag = 'internal scratch']
  %s0 = inlined_call_operand.vmem [shape: f32[2,8192,64], index: 0, kind: input, shape index: {}]
  %s1 = inlined_call_operand.vmem [shape: f32[2,8192,1], index: 1, kind: input, shape index: {}]
  %s2 = inlined_call_operand.vmem [shape: f32[1,64], index: 2, kind: input, shape index: {}]
  %s3 = inlined_call_operand.vmem [shape: f32[1,64], index: 3, kind: input, shape index: {}]
  %s4 = inlined_call_operand.vmem [shape: f32[64,64], index: 4, kind: input, shape index: {}]
  %s5 = inlined_call_operand.vmem [shape: bf16[2,8192,32], index: 5, kind: output, shape index: {0}]
  %s6 = inlined_call_operand.vmem [shape: bf16[2,8192,32], index: 6, kind: output, shape index: {1}]
  %7 = xla_tuple %s5, %s6
  %s8 = sld [smem:[#allocation0]]
  $region61: #{tpu_custom_call.1} parent=0
    _
  %s10 = ssub.s32 1, %s8
  %s11 = scalar_select 0, %s10, %s8
  loop: start=0, step=1, limit=130
  $region2: #{tpu_custom_call.1} parent=0 // loop_pre_header
    _
  $region3: #{tpu_custom_call.1} parent=0 // loop_header
    %s13 = sphi 0, %s17
    %p14 = scmp.ge.s32.totalorder %s13, 130
    %s20 = sphi 0, %s32
    %s21 = sphi 0, %s28
    %s22 = sphi 0, %s20
    %s23 = sphi 0, %s21
    %s24 = sphi 0, %s22
    %s25 = sphi 0, %s23
    %s37 = sphi 0, %s39
    %s40 = sphi 0, %s37
    %s41 = sphi 0, %s40
    %s57 = sphi 0, %s41
    %s65 = sphi 0, %s67
    %s68 = sphi 0, %s65
    %s69 = sphi 0, %s68
    %s85 = sphi 0, %s69
    %s89 = sphi 0, %s89
    %s91 = sphi 0, %s89
    %s92 = sphi 0, %s91
    %s106 = sphi 0, %s92
    %s110 = sphi 0, %s110
    %s112 = sphi 0, %s110
    %s113 = sphi 0, %s112
    %s127 = sphi 0, %s113
    %s131 = sphi 0, %s131
    %s133 = sphi 0, %s131
    %s134 = sphi 0, %s133
    %s148 = sphi 0, %s134
    %s156 = sphi 0, %s158
    %s159 = sphi 0, %s156
    %s160 = sphi 0, %s159
    %s176 = sphi 0, %s160
    %s184 = sphi 0, %s186
    %s187 = sphi 0, %s184
    %s188 = sphi 0, %s187
    %s204 = sphi 0, %s188
  $region4: #{tpu_custom_call.1} parent=0 // loop_header_branch
    %16 = sbr.rel (%p14) target = $region8
  $region5: #{tpu_custom_call.1} parent=0 // loop_body
    %s18 = ssub.s32 %s13, 1
    %s19 = ssub.s32 %s13, 2
    %s26 = sadd.s32 1, %s21
    %p27 = scmp.ge.s32.totalorder %s26, 64
    %s28 = scalar_select %p27, 0, %s26
    %s29 = sadd.s32 1, %s20
    %s30 = scalar_select %p27, %s29, %s20
    %p31 = scmp.ge.s32.totalorder %s30, 2
    %s32 = scalar_select %p31, 0, %s30
    %s33 = ssub.s32 %s20, %s32
    %s34 = ssub.s32 %s21, %s28
    %s35 = sor.u32 %s33, %s34
    %p36 = scmp.eq.s32.totalorder %s35, 0
    %s38 = sadd.s32 %s37, 1
    %s39 = scalar_select %p36, %s37, %s38
    %p42 = pneg %p36
    %p43 = scmp.eq.s32.totalorder %s13, 127
    %p44 = por %p42, %p43
    %p45 = scmp.ne.s32.totalorder %s37, %s40
    %p46 = scmp.eq.s32.totalorder %s13, 0
    %p47 = por %p45, %p46
    %p48 = scmp.ne.s32.totalorder %s37, %s40
    %p49 = scmp.eq.s32.totalorder %s18, 127
    %p50 = por %p48, %p49
    %p51 = scmp.ne.s32.totalorder %s40, %s41
    %p52 = scmp.eq.s32.totalorder %s18, 0
    %p53 = por %p51, %p52
    %p54 = scmp.ne.s32.totalorder %s40, %s41
    %p55 = scmp.eq.s32.totalorder %s19, 127
    %p56 = por %p54, %p55
    %p58 = scmp.ne.s32.totalorder %s41, %s57
    %p59 = scmp.eq.s32.totalorder %s19, 0
    %p60 = por %p58, %p59
    %s61 = ssub.s32 %s20, %s32
    %s62 = ssub.s32 %s21, %s28
    %s63 = sor.u32 %s61, %s62
    %p64 = scmp.eq.s32.totalorder %s63, 0
    %s66 = sadd.s32 %s65, 1
    %s67 = scalar_select %p64, %s65, %s66
    %p70 = pneg %p64
    %p71 = scmp.eq.s32.totalorder %s13, 127
    %p72 = por %p70, %p71
    %p73 = scmp.ne.s32.totalorder %s65, %s68
    %p74 = scmp.eq.s32.totalorder %s13, 0
    %p75 = por %p73, %p74
    %p76 = scmp.ne.s32.totalorder %s65, %s68
    %p77 = scmp.eq.s32.totalorder %s18, 127
    %p78 = por %p76, %p77
    %p79 = scmp.ne.s32.totalorder %s68, %s69
    %p80 = scmp.eq.s32.totalorder %s18, 0
    %p81 = por %p79, %p80
    %p82 = scmp.ne.s32.totalorder %s68, %s69
    %p83 = scmp.eq.s32.totalorder %s19, 127
    %p84 = por %p82, %p83
    %p86 = scmp.ne.s32.totalorder %s69, %s85
    %p87 = scmp.eq.s32.totalorder %s19, 0
    %p88 = por %p86, %p87
    %s90 = sadd.s32 %s89, 1
    %p93 = scmp.eq.s32.totalorder %s13, 127
    %p94 = scmp.ne.s32.totalorder %s89, %s91
    %p95 = scmp.eq.s32.totalorder %s13, 0
    %p96 = por %p94, %p95
    %p97 = scmp.ne.s32.totalorder %s89, %s91
    %p98 = scmp.eq.s32.totalorder %s18, 127
    %p99 = por %p97, %p98
    %p100 = scmp.ne.s32.totalorder %s91, %s92
    %p101 = scmp.eq.s32.totalorder %s18, 0
    %p102 = por %p100, %p101
    %p103 = scmp.ne.s32.totalorder %s91, %s92
    %p104 = scmp.eq.s32.totalorder %s19, 127
    %p105 = por %p103, %p104
    %p107 = scmp.ne.s32.totalorder %s92, %s106
    %p108 = scmp.eq.s32.totalorder %s19, 0
    %p109 = por %p107, %p108
    %s111 = sadd.s32 %s110, 1
    %p114 = scmp.eq.s32.totalorder %s13, 127
    %p115 = scmp.ne.s32.totalorder %s110, %s112
    %p116 = scmp.eq.s32.totalorder %s13, 0
    %p117 = por %p115, %p116
    %p118 = scmp.ne.s32.totalorder %s110, %s112
    %p119 = scmp.eq.s32.totalorder %s18, 127
    %p120 = por %p118, %p119
    %p121 = scmp.ne.s32.totalorder %s112, %s113
    %p122 = scmp.eq.s32.totalorder %s18, 0
    %p123 = por %p121, %p122
    %p124 = scmp.ne.s32.totalorder %s112, %s113
    %p125 = scmp.eq.s32.totalorder %s19, 127
    %p126 = por %p124, %p125
    %p128 = scmp.ne.s32.totalorder %s113, %s127
    %p129 = scmp.eq.s32.totalorder %s19, 0
    %p130 = por %p128, %p129
    %s132 = sadd.s32 %s131, 1
    %p135 = scmp.eq.s32.totalorder %s13, 127
    %p136 = scmp.ne.s32.totalorder %s131, %s133
    %p137 = scmp.eq.s32.totalorder %s13, 0
    %p138 = por %p136, %p137
    %p139 = scmp.ne.s32.totalorder %s131, %s133
    %p140 = scmp.eq.s32.totalorder %s18, 127
    %p141 = por %p139, %p140
    %p142 = scmp.ne.s32.totalorder %s133, %s134
    %p143 = scmp.eq.s32.totalorder %s18, 0
    %p144 = por %p142, %p143
    %p145 = scmp.ne.s32.totalorder %s133, %s134
    %p146 = scmp.eq.s32.totalorder %s19, 127
    %p147 = por %p145, %p146
    %p149 = scmp.ne.s32.totalorder %s134, %s148
    %p150 = scmp.eq.s32.totalorder %s19, 0
    %p151 = por %p149, %p150
    %s152 = ssub.s32 %s20, %s32
    %s153 = ssub.s32 %s21, %s28
    %s154 = sor.u32 %s152, %s153
    %p155 = scmp.eq.s32.totalorder %s154, 0
    %s157 = sadd.s32 %s156, 1
    %s158 = scalar_select %p155, %s156, %s157
    %p161 = pneg %p155
    %p162 = scmp.eq.s32.totalorder %s13, 127
    %p163 = por %p161, %p162
    %p164 = scmp.ne.s32.totalorder %s156, %s159
    %p165 = scmp.eq.s32.totalorder %s13, 0
    %p166 = por %p164, %p165
    %p167 = scmp.ne.s32.totalorder %s156, %s159
    %p168 = scmp.eq.s32.totalorder %s18, 127
    %p169 = por %p167, %p168
    %p170 = scmp.ne.s32.totalorder %s159, %s160
    %p171 = scmp.eq.s32.totalorder %s18, 0
    %p172 = por %p170, %p171
    %p173 = scmp.ne.s32.totalorder %s159, %s160
    %p174 = scmp.eq.s32.totalorder %s19, 127
    %p175 = por %p173, %p174
    %p177 = scmp.ne.s32.totalorder %s160, %s176
    %p178 = scmp.eq.s32.totalorder %s19, 0
    %p179 = por %p177, %p178
    %s180 = ssub.s32 %s20, %s32
    %s181 = ssub.s32 %s21, %s28
    %s182 = sor.u32 %s180, %s181
    %p183 = scmp.eq.s32.totalorder %s182, 0
    %s185 = sadd.s32 %s184, 1
    %s186 = scalar_select %p183, %s184, %s185
    %p189 = pneg %p183
    %p190 = scmp.eq.s32.totalorder %s13, 127
    %p191 = por %p189, %p190
    %p192 = scmp.ne.s32.totalorder %s184, %s187
    %p193 = scmp.eq.s32.totalorder %s13, 0
    %p194 = por %p192, %p193
    %p195 = scmp.ne.s32.totalorder %s184, %s187
    %p196 = scmp.eq.s32.totalorder %s18, 127
    %p197 = por %p195, %p196
    %p198 = scmp.ne.s32.totalorder %s187, %s188
    %p199 = scmp.eq.s32.totalorder %s18, 0
    %p200 = por %p198, %p199
    %p201 = scmp.ne.s32.totalorder %s187, %s188
    %p202 = scmp.eq.s32.totalorder %s19, 127
    %p203 = por %p201, %p202
    %p205 = scmp.ne.s32.totalorder %s188, %s204
    %p206 = scmp.eq.s32.totalorder %s19, 0
    %p207 = por %p205, %p206
    %p208 = scmp.le.s32.totalorder 1, %s13
    %p209 = scmp.lt.s32.totalorder %s13, 129
    %p210 = pnand %p208, %p209
    %p211 = pneg %p210
    // Predicated region
    $region9: #{tpu_custom_call.1} parent=5 // pred_check
      _
    $region10: #{tpu_custom_call.1} parent=5 // pred_check_branch
      %213 = sbr.rel (%p210) target = $region12
    $region11: #{tpu_custom_call.1} parent=5 // pred_region
      %s214 = ssub.s32 %s13, 1
      // Predicated region
      $region13: #{tpu_custom_call.1} parent=11 // pred_check
        %p215 = pneg %p102
      $region14: #{tpu_custom_call.1} parent=11 // pred_check_branch
        %217 = sbr.rel (%p215) target = $region16
      $region15: #{tpu_custom_call.1} parent=11 // pred_region
        _
      $region16: #{tpu_custom_call.1} parent=11 // pred_fallthru
        _
      // Predicated region
      $region17: #{tpu_custom_call.1} parent=11 // pred_check
        %p218 = pneg %p123
      $region18: #{tpu_custom_call.1} parent=11 // pred_check_branch
        %220 = sbr.rel (%p218) target = $region20
      $region19: #{tpu_custom_call.1} parent=11 // pred_region
        _
      $region20: #{tpu_custom_call.1} parent=11 // pred_fallthru
        _
      // Predicated region
      $region21: #{tpu_custom_call.1} parent=11 // pred_check
        %p221 = pneg %p144
      $region22: #{tpu_custom_call.1} parent=11 // pred_check_branch
        %223 = sbr.rel (%p221) target = $region24
      $region23: #{tpu_custom_call.1} parent=11 // pred_region
        _
      $region24: #{tpu_custom_call.1} parent=11 // pred_fallthru
        _
    $region12: #{tpu_custom_call.1} parent=5 // pred_fallthru
      _
    %p224 = scmp.lt.s32.totalorder %s13, 128
    // Predicated region
    $region25: #{tpu_custom_call.1} parent=5 // pred_check
      %p225 = pneg %p224
    $region26: #{tpu_custom_call.1} parent=5 // pred_check_branch
      %227 = sbr.rel (%p225) target = $region28
    $region27: #{tpu_custom_call.1} parent=5 // pred_region
      // Predicated region
      $region29: #{tpu_custom_call.1} parent=27 // pred_check
        %p228 = pneg %p47
      $region30: #{tpu_custom_call.1} parent=27 // pred_check_branch
        %230 = sbr.rel (%p228) target = $region32
      $region31: #{tpu_custom_call.1} parent=27 // pred_region
        %s231 = smul.u32 16, %s21
        %p232 = scmp.lt.s32.totalorder %s20, 1
        %s233 = scalar_select %p232, %s20, 1
        %p234 = scmp.lt.s32.totalorder %s231, 1023
        %s235 = scalar_select %p234, %s231, 1023
        %s236 = smul.addr %s233, 1024
        %s237 = sadd.s32 %s235, %s236
        %s238 = smul.addr %s237, 8
        %s239 = scalar_lea.vmem %s0, %s238
        %s240 = smul.u32 16, %s21
      $region32: #{tpu_custom_call.1} parent=27 // pred_fallthru
        _
      // Predicated region
      $region33: #{tpu_custom_call.1} parent=27 // pred_check
        %p241 = pneg %p75
      $region34: #{tpu_custom_call.1} parent=27 // pred_check_branch
        %243 = sbr.rel (%p241) target = $region36
      $region35: #{tpu_custom_call.1} parent=27 // pred_region
        %s244 = smul.u32 16, %s21
        %p245 = scmp.lt.s32.totalorder %s20, 1
        %s246 = scalar_select %p245, %s20, 1
        %p247 = scmp.lt.s32.totalorder %s244, 1023
        %s248 = scalar_select %p247, %s244, 1023
        %s249 = smul.addr %s246, 1024
        %s250 = sadd.s32 %s248, %s249
        %s251 = smul.addr %s250, 8
        %s252 = scalar_lea.vmem %s1, %s251
        %s253 = smul.u32 16, %s21
      $region36: #{tpu_custom_call.1} parent=27 // pred_fallthru
        _
    $region28: #{tpu_custom_call.1} parent=5 // pred_fallthru
      _
    %p254 = scmp.le.s32.totalorder 1, %s13
    %p255 = scmp.lt.s32.totalorder %s13, 129
    %p256 = pnand %p254, %p255
    %p257 = pneg %p256
    // Predicated region
    $region37: #{tpu_custom_call.1} parent=5 // pred_check
      _
    $region38: #{tpu_custom_call.1} parent=5 // pred_check_branch
      %259 = sbr.rel (%p256) target = $region40
    $region39: #{tpu_custom_call.1} parent=5 // pred_region
      %s260 = ssub.s32 %s13, 1
      %s261 = smul.u32 16, %s23
      %p262 = scmp.lt.s32.totalorder %s22, 1
      %s263 = scalar_select %p262, %s22, 1
      %p264 = scmp.lt.s32.totalorder %s261, 1023
      %s265 = scalar_select %p264, %s261, 1023
      %s266 = smul.addr %s263, 1024
      %s267 = sadd.s32 %s265, %s266
      %s268 = smul.addr %s267, 8
      %s269 = scalar_lea.vmem %s0, %s268
      %p270 = pneg %p53
      %p271 = pneg %p50
      %s272 = smul.u32 16, %s23
      %p273 = scmp.lt.s32.totalorder %s22, 1
      %s274 = scalar_select %p273, %s22, 1
      %p275 = scmp.lt.s32.totalorder %s272, 1023
      %s276 = scalar_select %p275, %s272, 1023
      %s277 = smul.addr %s274, 1024
      %s278 = sadd.s32 %s276, %s277
      %s279 = smul.addr %s278, 8
      %s280 = scalar_lea.vmem %s1, %s279
      %p281 = pneg %p81
      %p282 = pneg %p78
      %p283 = pneg %p102
      %p284 = pneg %p99
      %p285 = pneg %p123
      %p286 = pneg %p120
      %p287 = pneg %p144
      %p288 = pneg %p141
      %p289 = pneg %p172
      %p290 = pneg %p169
      %s291 = smul.u32 16, %s23
      %p292 = scmp.lt.s32.totalorder %s22, 1
      %s293 = scalar_select %p292, %s22, 1
      %p294 = scmp.lt.s32.totalorder %s291, 1023
      %s295 = scalar_select %p294, %s291, 1023
      %s296 = smul.addr %s293, 1024
      %s297 = sadd.s32 %s295, %s296
      %s298 = smul.addr %s297, 4
      %s299 = scalar_lea.vmem %s5, %s298
      %p300 = pneg %p200
      %p301 = pneg %p197
      %s302 = smul.u32 16, %s23
      %p303 = scmp.lt.s32.totalorder %s22, 1
      %s304 = scalar_select %p303, %s22, 1
      %p305 = scmp.lt.s32.totalorder %s302, 1023
      %s306 = scalar_select %p305, %s302, 1023
      %s307 = smul.addr %s304, 1024
      %s308 = sadd.s32 %s306, %s307
      %s309 = smul.addr %s308, 4
      %s310 = scalar_lea.vmem %s6, %s309
      %s311 = smul.u32 16, %s23
      %p312 = scmp.lt.s32.totalorder %s22, 1
      %s313 = scalar_select %p312, %s22, 1
      %p314 = scmp.lt.s32.totalorder %s311, 1023
      %s315 = scalar_select %p314, %s311, 1023
      %s316 = smul.addr %s313, 1024
      %s317 = sadd.s32 %s315, %s316
      %s318 = smul.addr %s317, 8
      %s319 = scalar_lea.vmem %s0, %s318
      %s320 = smul.u32 16, %s23
      %s321 = smul.u32 16, %s23
      %p322 = scmp.lt.s32.totalorder %s22, 1
      %s323 = scalar_select %p322, %s22, 1
      %p324 = scmp.lt.s32.totalorder %s321, 1023
      %s325 = scalar_select %p324, %s321, 1023
      %s326 = smul.addr %s323, 1024
      %s327 = sadd.s32 %s325, %s326
      %s328 = smul.addr %s327, 8
      %s329 = scalar_lea.vmem %s1, %s328
      %s330 = smul.u32 16, %s23
      %s331 = smul.u32 16, %s23
      %p332 = scmp.lt.s32.totalorder %s22, 1
      %s333 = scalar_select %p332, %s22, 1
      %p334 = scmp.lt.s32.totalorder %s331, 1023
      %s335 = scalar_select %p334, %s331, 1023
      %s336 = smul.addr %s333, 1024
      %s337 = sadd.s32 %s335, %s336
      %s338 = smul.addr %s337, 4
      %s339 = scalar_lea.vmem %s5, %s338
      %s340 = smul.u32 16, %s23
      %s341 = smul.u32 16, %s23
      %p342 = scmp.lt.s32.totalorder %s22, 1
      %s343 = scalar_select %p342, %s22, 1
      %p344 = scmp.lt.s32.totalorder %s341, 1023
      %s345 = scalar_select %p344, %s341, 1023
      %s346 = smul.addr %s343, 1024
      %s347 = sadd.s32 %s345, %s346
      %s348 = smul.addr %s347, 4
      %s349 = scalar_lea.vmem %s6, %s348
      %s350 = smul.u32 16, %s23
      %v351 = vld [vmem:[%s319] sm:$0xff]
      %v352 = vld [vmem:[%s319 + $0x8] sm:$0xff]
      %v353 = vld [vmem:[%s319 + $0x10] sm:$0xff]
      %v354 = vld [vmem:[%s319 + $0x18] sm:$0xff]
      %v355 = vld [vmem:[%s319 + $0x20] sm:$0xff]
      %v356 = vld [vmem:[%s319 + $0x28] sm:$0xff]
      %v357 = vld [vmem:[%s319 + $0x30] sm:$0xff]
      %v358 = vld [vmem:[%s319 + $0x38] sm:$0xff]
      %v359 = vld [vmem:[%s319 + $0x40] sm:$0xff]
      %v360 = vld [vmem:[%s319 + $0x48] sm:$0xff]
      %v361 = vld [vmem:[%s319 + $0x50] sm:$0xff]
      %v362 = vld [vmem:[%s319 + $0x58] sm:$0xff]
      %v363 = vld [vmem:[%s319 + $0x60] sm:$0xff]
      %v364 = vld [vmem:[%s319 + $0x68] sm:$0xff]
      %v365 = vld [vmem:[%s319 + $0x70] sm:$0xff]
      %v366 = vld [vmem:[%s319 + $0x78] sm:$0xff]
      %vm367 = vcmask 523264
      %v368 = vsel %vm367, %v351, 0.0
      %369 = vadd.xlane.f32.xlu0 %v368
      %v370 = vpop.xlane.xlu0 %369
      %v371 = vsel %vm367, %v352, 0.0
      %372 = vadd.xlane.f32.xlu0 %v371
      %v373 = vpop.xlane.xlu0 %372
      %v374 = vsel %vm367, %v353, 0.0
      %375 = vadd.xlane.f32.xlu0 %v374
      %v376 = vpop.xlane.xlu0 %375
      %v377 = vsel %vm367, %v354, 0.0
      %378 = vadd.xlane.f32.xlu0 %v377
      %v379 = vpop.xlane.xlu0 %378
      %v380 = vsel %vm367, %v355, 0.0
      %381 = vadd.xlane.f32.xlu0 %v380
      %v382 = vpop.xlane.xlu0 %381
      %v383 = vsel %vm367, %v356, 0.0
      %384 = vadd.xlane.f32.xlu0 %v383
      %v385 = vpop.xlane.xlu0 %384
      %v386 = vsel %vm367, %v357, 0.0
      %387 = vadd.xlane.f32.xlu0 %v386
      %v388 = vpop.xlane.xlu0 %387
      %v389 = vsel %vm367, %v358, 0.0
      %390 = vadd.xlane.f32.xlu0 %v389
      %v391 = vpop.xlane.xlu0 %390
      %v392 = vsel %vm367, %v359, 0.0
      %393 = vadd.xlane.f32.xlu0 %v392
      %v394 = vpop.xlane.xlu0 %393
      %v395 = vsel %vm367, %v360, 0.0
      %396 = vadd.xlane.f32.xlu0 %v395
      %v397 = vpop.xlane.xlu0 %396
      %v398 = vsel %vm367, %v361, 0.0
      %399 = vadd.xlane.f32.xlu0 %v398
      %v400 = vpop.xlane.xlu0 %399
      %v401 = vsel %vm367, %v362, 0.0
      %402 = vadd.xlane.f32.xlu0 %v401
      %v403 = vpop.xlane.xlu0 %402
      %v404 = vsel %vm367, %v363, 0.0
      %405 = vadd.xlane.f32.xlu0 %v404
      %v406 = vpop.xlane.xlu0 %405
      %v407 = vsel %vm367, %v364, 0.0
      %408 = vadd.xlane.f32.xlu0 %v407
      %v409 = vpop.xlane.xlu0 %408
      %v410 = vsel %vm367, %v365, 0.0
      %411 = vadd.xlane.f32.xlu0 %v410
      %v412 = vpop.xlane.xlu0 %411
      %v413 = vsel %vm367, %v366, 0.0
      %414 = vadd.xlane.f32.xlu0 %v413
      %v415 = vpop.xlane.xlu0 %414
      %v416 = vrcp.pop 64.0
      %v417 = vmul.f32 %v370, %v416
      %v418 = vmul.f32 %v373, %v416
      %v419 = vmul.f32 %v376, %v416
      %v420 = vmul.f32 %v379, %v416
      %v421 = vmul.f32 %v382, %v416
      %v422 = vmul.f32 %v385, %v416
      %v423 = vmul.f32 %v388, %v416
      %v424 = vmul.f32 %v391, %v416
      %v425 = vmul.f32 %v394, %v416
      %v426 = vmul.f32 %v397, %v416
      %v427 = vmul.f32 %v400, %v416
      %v428 = vmul.f32 %v403, %v416
      %v429 = vmul.f32 %v406, %v416
      %v430 = vmul.f32 %v409, %v416
      %v431 = vmul.f32 %v412, %v416
      %v432 = vmul.f32 %v415, %v416
      %v433 = vsub.f32 %v351, %v417
      %v434 = vsub.f32 %v352, %v418
      %v435 = vsub.f32 %v353, %v419
      %v436 = vsub.f32 %v354, %v420
      %v437 = vsub.f32 %v355, %v421
      %v438 = vsub.f32 %v356, %v422
      %v439 = vsub.f32 %v357, %v423
      %v440 = vsub.f32 %v358, %v424
      %v441 = vsub.f32 %v359, %v425
      %v442 = vsub.f32 %v360, %v426
      %v443 = vsub.f32 %v361, %v427
      %v444 = vsub.f32 %v362, %v428
      %v445 = vsub.f32 %v363, %v429
      %v446 = vsub.f32 %v364, %v430
      %v447 = vsub.f32 %v365, %v431
      %v448 = vsub.f32 %v366, %v432
      %v449 = vmul.f32 %v433, %v433
      %v450 = vmul.f32 %v434, %v434
      %v451 = vmul.f32 %v435, %v435
      %v452 = vmul.f32 %v436, %v436
      %v453 = vmul.f32 %v437, %v437
      %v454 = vmul.f32 %v438, %v438
      %v455 = vmul.f32 %v439, %v439
      %v456 = vmul.f32 %v440, %v440
      %v457 = vmul.f32 %v441, %v441
      %v458 = vmul.f32 %v442, %v442
      %v459 = vmul.f32 %v443, %v443
      %v460 = vmul.f32 %v444, %v444
      %v461 = vmul.f32 %v445, %v445
      %v462 = vmul.f32 %v446, %v446
      %v463 = vmul.f32 %v447, %v447
      %v464 = vmul.f32 %v448, %v448
      %v465 = vsel %vm367, %v449, 0.0
      %466 = vadd.xlane.f32.xlu0 %v465
      %v467 = vpop.xlane.xlu0 %466
      %v468 = vsel %vm367, %v450, 0.0
      %469 = vadd.xlane.f32.xlu0 %v468
      %v470 = vpop.xlane.xlu0 %469
      %v471 = vsel %vm367, %v451, 0.0
      %472 = vadd.xlane.f32.xlu0 %v471
      %v473 = vpop.xlane.xlu0 %472
      %v474 = vsel %vm367, %v452, 0.0
      %475 = vadd.xlane.f32.xlu0 %v474
      %v476 = vpop.xlane.xlu0 %475
      %v477 = vsel %vm367, %v453, 0.0
      %478 = vadd.xlane.f32.xlu0 %v477
      %v479 = vpop.xlane.xlu0 %478
      %v480 = vsel %vm367, %v454, 0.0
      %481 = vadd.xlane.f32.xlu0 %v480
      %v482 = vpop.xlane.xlu0 %481
      %v483 = vsel %vm367, %v455, 0.0
      %484 = vadd.xlane.f32.xlu0 %v483
      %v485 = vpop.xlane.xlu0 %484
      %v486 = vsel %vm367, %v456, 0.0
      %487 = vadd.xlane.f32.xlu0 %v486
      %v488 = vpop.xlane.xlu0 %487
      %v489 = vsel %vm367, %v457, 0.0
      %490 = vadd.xlane.f32.xlu0 %v489
      %v491 = vpop.xlane.xlu0 %490
      %v492 = vsel %vm367, %v458, 0.0
      %493 = vadd.xlane.f32.xlu0 %v492
      %v494 = vpop.xlane.xlu0 %493
      %v495 = vsel %vm367, %v459, 0.0
      %496 = vadd.xlane.f32.xlu0 %v495
      %v497 = vpop.xlane.xlu0 %496
      %v498 = vsel %vm367, %v460, 0.0
      %499 = vadd.xlane.f32.xlu0 %v498
      %v500 = vpop.xlane.xlu0 %499
      %v501 = vsel %vm367, %v461, 0.0
      %502 = vadd.xlane.f32.xlu0 %v501
      %v503 = vpop.xlane.xlu0 %502
      %v504 = vsel %vm367, %v462, 0.0
      %505 = vadd.xlane.f32.xlu0 %v504
      %v506 = vpop.xlane.xlu0 %505
      %v507 = vsel %vm367, %v463, 0.0
      %508 = vadd.xlane.f32.xlu0 %v507
      %v509 = vpop.xlane.xlu0 %508
      %v510 = vsel %vm367, %v464, 0.0
      %511 = vadd.xlane.f32.xlu0 %v510
      %v512 = vpop.xlane.xlu0 %511
      %v513 = vmul.f32 %v467, %v416
      %v514 = vmul.f32 %v470, %v416
      %v515 = vmul.f32 %v473, %v416
      %v516 = vmul.f32 %v476, %v416
      %v517 = vmul.f32 %v479, %v416
      %v518 = vmul.f32 %v482, %v416
      %v519 = vmul.f32 %v485, %v416
      %v520 = vmul.f32 %v488, %v416
      %v521 = vmul.f32 %v491, %v416
      %v522 = vmul.f32 %v494, %v416
      %v523 = vmul.f32 %v497, %v416
      %v524 = vmul.f32 %v500, %v416
      %v525 = vmul.f32 %v503, %v416
      %v526 = vmul.f32 %v506, %v416
      %v527 = vmul.f32 %v509, %v416
      %v528 = vmul.f32 %v512, %v416
      %v529 = vadd.f32 %v513, 1e-05
      %v530 = vadd.f32 %v514, 1e-05
      %v531 = vadd.f32 %v515, 1e-05
      %v532 = vadd.f32 %v516, 1e-05
      %v533 = vadd.f32 %v517, 1e-05
      %v534 = vadd.f32 %v518, 1e-05
      %v535 = vadd.f32 %v519, 1e-05
      %v536 = vadd.f32 %v520, 1e-05
      %v537 = vadd.f32 %v521, 1e-05
      %v538 = vadd.f32 %v522, 1e-05
      %v539 = vadd.f32 %v523, 1e-05
      %v540 = vadd.f32 %v524, 1e-05
      %v541 = vadd.f32 %v525, 1e-05
      %v542 = vadd.f32 %v526, 1e-05
      %v543 = vadd.f32 %v527, 1e-05
      %v544 = vadd.f32 %v528, 1e-05
      %v545 = vrsqrt.pop %v529
      %v546 = vrsqrt.pop %v530
      %v547 = vrsqrt.pop %v531
      %v548 = vrsqrt.pop %v532
      %v549 = vrsqrt.pop %v533
      %v550 = vrsqrt.pop %v534
      %v551 = vrsqrt.pop %v535
      %v552 = vrsqrt.pop %v536
      %v553 = vrsqrt.pop %v537
      %v554 = vrsqrt.pop %v538
      %v555 = vrsqrt.pop %v539
      %v556 = vrsqrt.pop %v540
      %v557 = vrsqrt.pop %v541
      %v558 = vrsqrt.pop %v542
      %v559 = vrsqrt.pop %v543
      %v560 = vrsqrt.pop %v544
      %v561 = vmul.f32 %v433, %v545
      %v562 = vmul.f32 %v434, %v546
      %v563 = vmul.f32 %v435, %v547
      %v564 = vmul.f32 %v436, %v548
      %v565 = vmul.f32 %v437, %v549
      %v566 = vmul.f32 %v438, %v550
      %v567 = vmul.f32 %v439, %v551
      %v568 = vmul.f32 %v440, %v552
      %v569 = vmul.f32 %v441, %v553
      %v570 = vmul.f32 %v442, %v554
      %v571 = vmul.f32 %v443, %v555
      %v572 = vmul.f32 %v444, %v556
      %v573 = vmul.f32 %v445, %v557
      %v574 = vmul.f32 %v446, %v558
      %v575 = vmul.f32 %v447, %v559
      %v576 = vmul.f32 %v448, %v560
      %v577 = vld [vmem:[%s2] sm:$0x1]
      %v579 = vlaneseq
      %v580 = vshrl.u32 %v579, 7
      %v581 = vsub.s32 0, %v580
      %v582 = vrot.slane %v577, %v581
      %v584 = vmul.f32 %v561, %v582
      %v585 = vmul.f32 %v562, %v582
      %v586 = vmul.f32 %v563, %v582
      %v587 = vmul.f32 %v564, %v582
      %v588 = vmul.f32 %v565, %v582
      %v589 = vmul.f32 %v566, %v582
      %v590 = vmul.f32 %v567, %v582
      %v591 = vmul.f32 %v568, %v582
      %v592 = vmul.f32 %v569, %v582
      %v593 = vmul.f32 %v570, %v582
      %v594 = vmul.f32 %v571, %v582
      %v595 = vmul.f32 %v572, %v582
      %v596 = vmul.f32 %v573, %v582
      %v597 = vmul.f32 %v574, %v582
      %v598 = vmul.f32 %v575, %v582
      %v599 = vmul.f32 %v576, %v582
      %v600 = vld [vmem:[%s3] sm:$0x1]
      %v602 = vlaneseq
      %v603 = vshrl.u32 %v602, 7
      %v604 = vsub.s32 0, %v603
      %v605 = vrot.slane %v600, %v604
      %v607 = vadd.f32 %v584, %v605
      %v608 = vadd.f32 %v585, %v605
      %v609 = vadd.f32 %v586, %v605
      %v610 = vadd.f32 %v587, %v605
      %v611 = vadd.f32 %v588, %v605
      %v612 = vadd.f32 %v589, %v605
      %v613 = vadd.f32 %v590, %v605
      %v614 = vadd.f32 %v591, %v605
      %v615 = vadd.f32 %v592, %v605
      %v616 = vadd.f32 %v593, %v605
      %v617 = vadd.f32 %v594, %v605
      %v618 = vadd.f32 %v595, %v605
      %v619 = vadd.f32 %v596, %v605
      %v620 = vadd.f32 %v597, %v605
      %v621 = vadd.f32 %v598, %v605
      %v622 = vadd.f32 %v599, %v605
      %v623 = vld [vmem:[%s4] sm:$0xff]
      %v624 = vld [vmem:[%s4 + $0x8] sm:$0xff]
      %v625 = vld [vmem:[%s4 + $0x10] sm:$0xff]
      %v626 = vld [vmem:[%s4 + $0x18] sm:$0xff]
      %v627 = vld [vmem:[%s4 + $0x20] sm:$0xff]
      %v628 = vld [vmem:[%s4 + $0x28] sm:$0xff]
      %v629 = vld [vmem:[%s4 + $0x30] sm:$0xff]
      %v630 = vld [vmem:[%s4 + $0x38] sm:$0xff]
      %v632 = vsel %vm367, %v607, 0
      %v635 = vsel %vm367, %v608, 0
      %v638 = vsel %vm367, %v609, 0
      %v641 = vsel %vm367, %v610, 0
      %v644 = vsel %vm367, %v611, 0
      %v647 = vsel %vm367, %v612, 0
      %v650 = vsel %vm367, %v613, 0
      %v653 = vsel %vm367, %v614, 0
      %v656 = vsel %vm367, %v615, 0
      %v659 = vsel %vm367, %v616, 0
      %v662 = vsel %vm367, %v617, 0
      %v665 = vsel %vm367, %v618, 0
      %v668 = vsel %vm367, %v619, 0
      %v671 = vsel %vm367, %v620, 0
      %v674 = vsel %vm367, %v621, 0
      %v677 = vsel %vm367, %v622, 0
      %679 = vmatprep.subr.mxu0 0.0
      %680 = vmatpush1.msra.mxu0 0.0
      %681 = vmatprep.subr.mxu0 0.0
      %682 = vmatpush1.msra.mxu0 0.0
      %683 = vmatprep.subr.mxu0 0.0
      %684 = vmatpush1.msra.mxu0 0.0
      %685 = vmatprep.subr.mxu0 0.0
      %686 = vmatpush1.msra.mxu0 0.0
      %687 = vmatprep.subr.mxu0 0.0
      %688 = vmatpush1.msra.mxu0 0.0
      %689 = vmatprep.subr.mxu0 0.0
      %690 = vmatpush1.msra.mxu0 0.0
      %691 = vmatprep.subr.mxu0 0.0
      %692 = vmatpush1.msra.mxu0 0.0
      %693 = vmatprep.subr.mxu0 0.0
      %694 = vmatpush1.msra.mxu0 0.0
      %695 = vmatprep.subr.mxu0 0.0
      %696 = vmatpush1.msra.mxu0 %v630
      %697 = vmatprep.subr.mxu0 0.0
      %698 = vmatpush1.msra.mxu0 %v629
      %699 = vmatprep.subr.mxu0 0.0
      %700 = vmatpush1.msra.mxu0 %v628
      %701 = vmatprep.subr.mxu0 0.0
      %702 = vmatpush1.msra.mxu0 %v627
      %703 = vmatprep.subr.mxu0 0.0
      %704 = vmatpush1.msra.mxu0 %v626
      %705 = vmatprep.subr.mxu0 0.0
      %706 = vmatpush1.msra.mxu0 %v625
      %707 = vmatprep.subr.mxu0 0.0
      %708 = vmatpush1.msra.mxu0 %v624
      %709 = vmatprep.subr.mxu0 0.0
      %710 = vmatpush1.msra.mxu0 %v623
      %711 = vmatprep.subr.mxu0 0.0
      %712 = vmatpush2.msra.mxu0 0.0
      %713 = vmatprep.subr.mxu0 0.0
      %714 = vmatpush2.msra.mxu0 0.0
      %715 = vmatprep.subr.mxu0 0.0
      %716 = vmatpush2.msra.mxu0 0.0
      %717 = vmatprep.subr.mxu0 0.0
      %718 = vmatpush2.msra.mxu0 0.0
      %719 = vmatprep.subr.mxu0 0.0
      %720 = vmatpush2.msra.mxu0 0.0
      %721 = vmatprep.subr.mxu0 0.0
      %722 = vmatpush2.msra.mxu0 0.0
      %723 = vmatprep.subr.mxu0 0.0
      %724 = vmatpush2.msra.mxu0 0.0
      %725 = vmatprep.subr.mxu0 0.0
      %726 = vmatpush2.msra.mxu0 0.0
      %727 = vmatprep.subr.mxu0 0.0
      %728 = vmatpush2.msra.mxu0 0.0
      %729 = vmatprep.subr.mxu0 0.0
      %730 = vmatpush2.msra.mxu0 0.0
      %731 = vmatprep.subr.mxu0 0.0
      %732 = vmatpush2.msra.mxu0 0.0
      %733 = vmatprep.subr.mxu0 0.0
      %734 = vmatpush2.msra.mxu0 0.0
      %735 = vmatprep.subr.mxu0 0.0
      %736 = vmatpush2.msra.mxu0 0.0
      %737 = vmatprep.subr.mxu0 0.0
      %738 = vmatpush2.msra.mxu0 0.0
      %739 = vmatprep.subr.mxu0 0.0
      %740 = vmatpush2.msra.mxu0 0.0
      %741 = vmatprep.subr.mxu0 0.0
      %742 = vmatpush2.msra.mxu0 0.0
      %743 = vmatprep.mubr.f32.mxu0 0.0
      %744 = vmatmul.mubr.f32.gmra.mxu0 %v632
      %v745 = vpop.f32.mrf.mxu0
      %v746 = vadd.f32 0.0, %v745
      %v747 = vpop.f32.mrf.mxu0
      %748 = vmatprep.mubr.f32.mxu0 0.0
      %749 = vmatmul.mubr.f32.gmra.mxu0 %v635
      %v750 = vpop.f32.mrf.mxu0
      %v751 = vadd.f32 0.0, %v750
      %v752 = vpop.f32.mrf.mxu0
      %753 = vmatprep.mubr.f32.mxu0 0.0
      %754 = vmatmul.mubr.f32.gmra.mxu0 %v638
      %v755 = vpop.f32.mrf.mxu0
      %v756 = vadd.f32 0.0, %v755
      %v757 = vpop.f32.mrf.mxu0
      %758 = vmatprep.mubr.f32.mxu0 0.0
      %759 = vmatmul.mubr.f32.gmra.mxu0 %v641
      %v760 = vpop.f32.mrf.mxu0
      %v761 = vadd.f32 0.0, %v760
      %v762 = vpop.f32.mrf.mxu0
      %763 = vmatprep.mubr.f32.mxu0 0.0
      %764 = vmatmul.mubr.f32.gmra.mxu0 %v644
      %v765 = vpop.f32.mrf.mxu0
      %v766 = vadd.f32 0.0, %v765
      %v767 = vpop.f32.mrf.mxu0
      %768 = vmatprep.mubr.f32.mxu0 0.0
      %769 = vmatmul.mubr.f32.gmra.mxu0 %v647
      %v770 = vpop.f32.mrf.mxu0
      %v771 = vadd.f32 0.0, %v770
      %v772 = vpop.f32.mrf.mxu0
      %773 = vmatprep.mubr.f32.mxu0 0.0
      %774 = vmatmul.mubr.f32.gmra.mxu0 %v650
      %v775 = vpop.f32.mrf.mxu0
      %v776 = vadd.f32 0.0, %v775
      %v777 = vpop.f32.mrf.mxu0
      %778 = vmatprep.mubr.f32.mxu0 0.0
      %779 = vmatmul.mubr.f32.gmra.mxu0 %v653
      %v780 = vpop.f32.mrf.mxu0
      %v781 = vadd.f32 0.0, %v780
      %v782 = vpop.f32.mrf.mxu0
      %783 = vmatprep.mubr.f32.mxu0 0.0
      %784 = vmatmul.mubr.f32.gmra.mxu0 %v656
      %v785 = vpop.f32.mrf.mxu0
      %v786 = vadd.f32 0.0, %v785
      %v787 = vpop.f32.mrf.mxu0
      %788 = vmatprep.mubr.f32.mxu0 0.0
      %789 = vmatmul.mubr.f32.gmra.mxu0 %v659
      %v790 = vpop.f32.mrf.mxu0
      %v791 = vadd.f32 0.0, %v790
      %v792 = vpop.f32.mrf.mxu0
      %793 = vmatprep.mubr.f32.mxu0 0.0
      %794 = vmatmul.mubr.f32.gmra.mxu0 %v662
      %v795 = vpop.f32.mrf.mxu0
      %v796 = vadd.f32 0.0, %v795
      %v797 = vpop.f32.mrf.mxu0
      %798 = vmatprep.mubr.f32.mxu0 0.0
      %799 = vmatmul.mubr.f32.gmra.mxu0 %v665
      %v800 = vpop.f32.mrf.mxu0
      %v801 = vadd.f32 0.0, %v800
      %v802 = vpop.f32.mrf.mxu0
      %803 = vmatprep.mubr.f32.mxu0 0.0
      %804 = vmatmul.mubr.f32.gmra.mxu0 %v668
      %v805 = vpop.f32.mrf.mxu0
      %v806 = vadd.f32 0.0, %v805
      %v807 = vpop.f32.mrf.mxu0
      %808 = vmatprep.mubr.f32.mxu0 0.0
      %809 = vmatmul.mubr.f32.gmra.mxu0 %v671
      %v810 = vpop.f32.mrf.mxu0
      %v811 = vadd.f32 0.0, %v810
      %v812 = vpop.f32.mrf.mxu0
      %813 = vmatprep.mubr.f32.mxu0 0.0
      %814 = vmatmul.mubr.f32.gmra.mxu0 %v674
      %v815 = vpop.f32.mrf.mxu0
      %v816 = vadd.f32 0.0, %v815
      %v817 = vpop.f32.mrf.mxu0
      %818 = vmatprep.mubr.f32.mxu0 0.0
      %819 = vmatmul.mubr.f32.gmra.mxu0 %v677
      %v820 = vpop.f32.mrf.mxu0
      %v821 = vadd.f32 0.0, %v820
      %v822 = vpop.f32.mrf.mxu0
      %823 = vdwg.mxu0
      %v824 = vld [vmem:[%s329] sm:$0xff]
      %v825 = vld [vmem:[%s329 + $0x8] sm:$0xff]
      %v826 = vld [vmem:[%s329 + $0x10] sm:$0xff]
      %v827 = vld [vmem:[%s329 + $0x18] sm:$0xff]
      %v828 = vld [vmem:[%s329 + $0x20] sm:$0xff]
      %v829 = vld [vmem:[%s329 + $0x28] sm:$0xff]
      %v830 = vld [vmem:[%s329 + $0x30] sm:$0xff]
      %v831 = vld [vmem:[%s329 + $0x38] sm:$0xff]
      %v832 = vld [vmem:[%s329 + $0x40] sm:$0xff]
      %v833 = vld [vmem:[%s329 + $0x48] sm:$0xff]
      %v834 = vld [vmem:[%s329 + $0x50] sm:$0xff]
      %v835 = vld [vmem:[%s329 + $0x58] sm:$0xff]
      %v836 = vld [vmem:[%s329 + $0x60] sm:$0xff]
      %v837 = vld [vmem:[%s329 + $0x68] sm:$0xff]
      %v838 = vld [vmem:[%s329 + $0x70] sm:$0xff]
      %v839 = vld [vmem:[%s329 + $0x78] sm:$0xff]
      %841 = vset.pattern.permute.xlu0 0
      %842 = vperm.xlu0 %841, %v824
      %v843 = vpop.permute.xlu0 %842
      %846 = vset.pattern.permute.xlu0 0
      %847 = vperm.xlu0 %846, %v825
      %v848 = vpop.permute.xlu0 %847
      %851 = vset.pattern.permute.xlu0 0
      %852 = vperm.xlu0 %851, %v826
      %v853 = vpop.permute.xlu0 %852
      %856 = vset.pattern.permute.xlu0 0
      %857 = vperm.xlu0 %856, %v827
      %v858 = vpop.permute.xlu0 %857
      %861 = vset.pattern.permute.xlu0 0
      %862 = vperm.xlu0 %861, %v828
      %v863 = vpop.permute.xlu0 %862
      %866 = vset.pattern.permute.xlu0 0
      %867 = vperm.xlu0 %866, %v829
      %v868 = vpop.permute.xlu0 %867
      %871 = vset.pattern.permute.xlu0 0
      %872 = vperm.xlu0 %871, %v830
      %v873 = vpop.permute.xlu0 %872
      %876 = vset.pattern.permute.xlu0 0
      %877 = vperm.xlu0 %876, %v831
      %v878 = vpop.permute.xlu0 %877
      %881 = vset.pattern.permute.xlu0 0
      %882 = vperm.xlu0 %881, %v832
      %v883 = vpop.permute.xlu0 %882
      %886 = vset.pattern.permute.xlu0 0
      %887 = vperm.xlu0 %886, %v833
      %v888 = vpop.permute.xlu0 %887
      %891 = vset.pattern.permute.xlu0 0
      %892 = vperm.xlu0 %891, %v834
      %v893 = vpop.permute.xlu0 %892
      %896 = vset.pattern.permute.xlu0 0
      %897 = vperm.xlu0 %896, %v835
      %v898 = vpop.permute.xlu0 %897
      %901 = vset.pattern.permute.xlu0 0
      %902 = vperm.xlu0 %901, %v836
      %v903 = vpop.permute.xlu0 %902
      %906 = vset.pattern.permute.xlu0 0
      %907 = vperm.xlu0 %906, %v837
      %v908 = vpop.permute.xlu0 %907
      %911 = vset.pattern.permute.xlu0 0
      %912 = vperm.xlu0 %911, %v838
      %v913 = vpop.permute.xlu0 %912
      %916 = vset.pattern.permute.xlu0 0
      %917 = vperm.xlu0 %916, %v839
      %v918 = vpop.permute.xlu0 %917
      %v920 = vmul.f32 %v746, %v843
      %v921 = vmul.f32 %v751, %v848
      %v922 = vmul.f32 %v756, %v853
      %v923 = vmul.f32 %v761, %v858
      %v924 = vmul.f32 %v766, %v863
      %v925 = vmul.f32 %v771, %v868
      %v926 = vmul.f32 %v776, %v873
      %v927 = vmul.f32 %v781, %v878
      %v928 = vmul.f32 %v786, %v883
      %v929 = vmul.f32 %v791, %v888
      %v930 = vmul.f32 %v796, %v893
      %v931 = vmul.f32 %v801, %v898
      %v932 = vmul.f32 %v806, %v903
      %v933 = vmul.f32 %v811, %v908
      %v934 = vmul.f32 %v816, %v913
      %v935 = vmul.f32 %v821, %v918
      %v936 = vpack.c.bf16 %v921, %v920
      %v937 = vpack.c.bf16 %v923, %v922
      %v938 = vpack.c.bf16 %v925, %v924
      %v939 = vpack.c.bf16 %v927, %v926
      %v940 = vpack.c.bf16 %v929, %v928
      %v941 = vpack.c.bf16 %v931, %v930
      %v942 = vpack.c.bf16 %v933, %v932
      %v943 = vpack.c.bf16 %v935, %v934
      %v952 = vunpack.c.l.b16 %v936
      %v953 = vunpack.c.h.b16 %v936
      %v954 = vunpack.c.l.b16 %v937
      %v955 = vunpack.c.h.b16 %v937
      %v956 = vunpack.c.l.b16 %v938
      %v957 = vunpack.c.h.b16 %v938
      %v958 = vunpack.c.l.b16 %v939
      %v959 = vunpack.c.h.b16 %v939
      %v960 = vunpack.c.l.b16 %v940
      %v961 = vunpack.c.h.b16 %v940
      %v962 = vunpack.c.l.b16 %v941
      %v963 = vunpack.c.h.b16 %v941
      %v964 = vunpack.c.l.b16 %v942
      %v965 = vunpack.c.h.b16 %v942
      %v966 = vunpack.c.l.b16 %v943
      %v967 = vunpack.c.h.b16 %v943
      %v968 = vpack.c.b16 %v952, %v952
      %v969 = vpack.c.b16 %v953, %v953
      %v970 = vpack.c.b16 %v954, %v954
      %v971 = vpack.c.b16 %v955, %v955
      %v972 = vpack.c.b16 %v956, %v956
      %v973 = vpack.c.b16 %v957, %v957
      %v974 = vpack.c.b16 %v958, %v958
      %v975 = vpack.c.b16 %v959, %v959
      %v976 = vpack.c.b16 %v960, %v960
      %v977 = vpack.c.b16 %v961, %v961
      %v978 = vpack.c.b16 %v962, %v962
      %v979 = vpack.c.b16 %v963, %v963
      %v980 = vpack.c.b16 %v964, %v964
      %v981 = vpack.c.b16 %v965, %v965
      %v982 = vpack.c.b16 %v966, %v966
      %v983 = vpack.c.b16 %v967, %v967
      %vm1000 = vcmask 257024
      %1001 = vst.msk [vmem:[%s339] sm:$0xf] %vm1000, %v968
      %1002 = vst.msk [vmem:[%s339 + $0x4] sm:$0xf] %vm1000, %v969
      %1003 = vst.msk [vmem:[%s339 + $0x8] sm:$0xf] %vm1000, %v970
      %1004 = vst.msk [vmem:[%s339 + $0xc] sm:$0xf] %vm1000, %v971
      %1005 = vst.msk [vmem:[%s339 + $0x10] sm:$0xf] %vm1000, %v972
      %1006 = vst.msk [vmem:[%s339 + $0x14] sm:$0xf] %vm1000, %v973
      %1007 = vst.msk [vmem:[%s339 + $0x18] sm:$0xf] %vm1000, %v974
      %1008 = vst.msk [vmem:[%s339 + $0x1c] sm:$0xf] %vm1000, %v975
      %1009 = vst.msk [vmem:[%s339 + $0x20] sm:$0xf] %vm1000, %v976
      %1010 = vst.msk [vmem:[%s339 + $0x24] sm:$0xf] %vm1000, %v977
      %1011 = vst.msk [vmem:[%s339 + $0x28] sm:$0xf] %vm1000, %v978
      %1012 = vst.msk [vmem:[%s339 + $0x2c] sm:$0xf] %vm1000, %v979
      %1013 = vst.msk [vmem:[%s339 + $0x30] sm:$0xf] %vm1000, %v980
      %1014 = vst.msk [vmem:[%s339 + $0x34] sm:$0xf] %vm1000, %v981
      %1015 = vst.msk [vmem:[%s339 + $0x38] sm:$0xf] %vm1000, %v982
      %1016 = vst.msk [vmem:[%s339 + $0x3c] sm:$0xf] %vm1000, %v983
      %1017 = vrot.lane.b32.xlu0 %v968, 96
      %v1018 = vpop.permute.xlu0 %1017
      %1019 = vrot.lane.b32.xlu0 %v969, 96
      %v1020 = vpop.permute.xlu0 %1019
      %1021 = vrot.lane.b32.xlu0 %v970, 96
      %v1022 = vpop.permute.xlu0 %1021
      %1023 = vrot.lane.b32.xlu0 %v971, 96
      %v1024 = vpop.permute.xlu0 %1023
      %1025 = vrot.lane.b32.xlu0 %v972, 96
      %v1026 = vpop.permute.xlu0 %1025
      %1027 = vrot.lane.b32.xlu0 %v973, 96
      %v1028 = vpop.permute.xlu0 %1027
      %1029 = vrot.lane.b32.xlu0 %v974, 96
      %v1030 = vpop.permute.xlu0 %1029
      %1031 = vrot.lane.b32.xlu0 %v975, 96
      %v1032 = vpop.permute.xlu0 %1031
      %1033 = vrot.lane.b32.xlu0 %v976, 96
      %v1034 = vpop.permute.xlu0 %1033
      %1035 = vrot.lane.b32.xlu0 %v977, 96
      %v1036 = vpop.permute.xlu0 %1035
      %1037 = vrot.lane.b32.xlu0 %v978, 96
      %v1038 = vpop.permute.xlu0 %1037
      %1039 = vrot.lane.b32.xlu0 %v979, 96
      %v1040 = vpop.permute.xlu0 %1039
      %1041 = vrot.lane.b32.xlu0 %v980, 96
      %v1042 = vpop.permute.xlu0 %1041
      %1043 = vrot.lane.b32.xlu0 %v981, 96
      %v1044 = vpop.permute.xlu0 %1043
      %1045 = vrot.lane.b32.xlu0 %v982, 96
      %v1046 = vpop.permute.xlu0 %1045
      %1047 = vrot.lane.b32.xlu0 %v983, 96
      %v1048 = vpop.permute.xlu0 %1047
      %1065 = vst.msk [vmem:[%s349] sm:$0xf] %vm1000, %v1018
      %1066 = vst.msk [vmem:[%s349 + $0x4] sm:$0xf] %vm1000, %v1020
      %1067 = vst.msk [vmem:[%s349 + $0x8] sm:$0xf] %vm1000, %v1022
      %1068 = vst.msk [vmem:[%s349 + $0xc] sm:$0xf] %vm1000, %v1024
      %1069 = vst.msk [vmem:[%s349 + $0x10] sm:$0xf] %vm1000, %v1026
      %1070 = vst.msk [vmem:[%s349 + $0x14] sm:$0xf] %vm1000, %v1028
      %1071 = vst.msk [vmem:[%s349 + $0x18] sm:$0xf] %vm1000, %v1030
      %1072 = vst.msk [vmem:[%s349 + $0x1c] sm:$0xf] %vm1000, %v1032
      %1073 = vst.msk [vmem:[%s349 + $0x20] sm:$0xf] %vm1000, %v1034
      %1074 = vst.msk [vmem:[%s349 + $0x24] sm:$0xf] %vm1000, %v1036
      %1075 = vst.msk [vmem:[%s349 + $0x28] sm:$0xf] %vm1000, %v1038
      %1076 = vst.msk [vmem:[%s349 + $0x2c] sm:$0xf] %vm1000, %v1040
      %1077 = vst.msk [vmem:[%s349 + $0x30] sm:$0xf] %vm1000, %v1042
      %1078 = vst.msk [vmem:[%s349 + $0x34] sm:$0xf] %vm1000, %v1044
      %1079 = vst.msk [vmem:[%s349 + $0x38] sm:$0xf] %vm1000, %v1046
      %1080 = vst.msk [vmem:[%s349 + $0x3c] sm:$0xf] %vm1000, %v1048
      %s1081 = smul.u32 16, %s23
      %p1082 = scmp.lt.s32.totalorder %s22, 1
      %s1083 = scalar_select %p1082, %s22, 1
      %p1084 = scmp.lt.s32.totalorder %s1081, 1023
      %s1085 = scalar_select %p1084, %s1081, 1023
      %s1086 = smul.addr %s1083, 1024
      %s1087 = sadd.s32 %s1085, %s1086
      %s1088 = smul.addr %s1087, 4
      %s1089 = scalar_lea.vmem %s5, %s1088
      %s1090 = smul.u32 16, %s23
      %p1091 = scmp.lt.s32.totalorder %s22, 1
      %s1092 = scalar_select %p1091, %s22, 1
      %p1093 = scmp.lt.s32.totalorder %s1090, 1023
      %s1094 = scalar_select %p1093, %s1090, 1023
      %s1095 = smul.addr %s1092, 1024
      %s1096 = sadd.s32 %s1094, %s1095
      %s1097 = smul.addr %s1096, 4
      %s1098 = scalar_lea.vmem %s6, %s1097
      // Predicated region
      $region41: #{tpu_custom_call.1} parent=39 // pred_check
        %p1099 = pneg %p169
      $region42: #{tpu_custom_call.1} parent=39 // pred_check_branch
        %1101 = sbr.rel (%p1099) target = $region44
      $region43: #{tpu_custom_call.1} parent=39 // pred_region
        %s1102 = smul.u32 16, %s23
      $region44: #{tpu_custom_call.1} parent=39 // pred_fallthru
        _
      // Predicated region
      $region45: #{tpu_custom_call.1} parent=39 // pred_check
        %p1103 = pneg %p197
      $region46: #{tpu_custom_call.1} parent=39 // pred_check_branch
        %1105 = sbr.rel (%p1103) target = $region48
      $region47: #{tpu_custom_call.1} parent=39 // pred_region
        %s1106 = smul.u32 16, %s23
      $region48: #{tpu_custom_call.1} parent=39 // pred_fallthru
        _
    $region40: #{tpu_custom_call.1} parent=5 // pred_fallthru
      _
    %p1107 = scmp.le.s32.totalorder 2, %s13
    // Predicated region
    $region49: #{tpu_custom_call.1} parent=5 // pred_check
      %p1108 = pneg %p1107
    $region50: #{tpu_custom_call.1} parent=5 // pred_check_branch
      %1110 = sbr.rel (%p1108) target = $region52
    $region51: #{tpu_custom_call.1} parent=5 // pred_region
      %s1111 = ssub.s32 %s13, 2
      // Predicated region
      $region53: #{tpu_custom_call.1} parent=51 // pred_check
        %p1112 = pneg %p175
      $region54: #{tpu_custom_call.1} parent=51 // pred_check_branch
        %1114 = sbr.rel (%p1112) target = $region56
      $region55: #{tpu_custom_call.1} parent=51 // pred_region
        %s1115 = smul.u32 16, %s25
        %p1116 = scmp.lt.s32.totalorder %s24, 1
        %s1117 = scalar_select %p1116, %s24, 1
        %p1118 = scmp.lt.s32.totalorder %s1115, 1023
        %s1119 = scalar_select %p1118, %s1115, 1023
        %s1120 = smul.addr %s1117, 1024
        %s1121 = sadd.s32 %s1119, %s1120
        %s1122 = smul.addr %s1121, 4
        %s1123 = scalar_lea.vmem %s5, %s1122
      $region56: #{tpu_custom_call.1} parent=51 // pred_fallthru
        _
      // Predicated region
      $region57: #{tpu_custom_call.1} parent=51 // pred_check
        %p1124 = pneg %p203
      $region58: #{tpu_custom_call.1} parent=51 // pred_check_branch
        %1126 = sbr.rel (%p1124) target = $region60
      $region59: #{tpu_custom_call.1} parent=51 // pred_region
        %s1127 = smul.u32 16, %s25
        %p1128 = scmp.lt.s32.totalorder %s24, 1
        %s1129 = scalar_select %p1128, %s24, 1
        %p1130 = scmp.lt.s32.totalorder %s1127, 1023
        %s1131 = scalar_select %p1130, %s1127, 1023
        %s1132 = smul.addr %s1129, 1024
        %s1133 = sadd.s32 %s1131, %s1132
        %s1134 = smul.addr %s1133, 4
        %s1135 = scalar_lea.vmem %s6, %s1134
      $region60: #{tpu_custom_call.1} parent=51 // pred_fallthru
        _
    $region52: #{tpu_custom_call.1} parent=5 // pred_fallthru
      _
  $region6: #{tpu_custom_call.1} parent=0 // loop_footer
    %s17 = sadd.s32 1, %s13
  $region7: #{tpu_custom_call.1} parent=0 // loop_footer_branch
    %12 = sbr.rel target = $region3
  $region8: #{tpu_custom_call.1} parent=0 // loop_exit
    _

</llo_original>
